<compile_context>
chip_gen: v7x
topology: tpu7x:2x2x1
jax: 0.10.0
libtpu: 0.0.40
codegen_flags: <defaults>
</compile_context>

<pallas_src>
import jax
import jax.numpy as jnp
from jax.experimental import pallas as pl
from jax.experimental.pallas import tpu as pltpu


def _vae_forward_kernel(x_ref, wenc_ref, benc_ref, wdec_ref, bdec_ref, eps_ref,
                        recon_ref, enc_ref):
    """Fused VAE forward on one batch tile: encode -> reparameterize -> decode.

      x:     [TB, D]   f32   (cast to bf16 on the VPU just before the MXU)
      wenc:  [D, 2L]   bf16  (w_mu | w_logvar fused along the lane axis)
      benc:  [1, 2L]   f32   (b_mu | b_logvar)
      wdec:  [L, D]    bf16
      bdec:  [1, D]    f32
      eps:   [TB, L]   f32
    Outputs:
      recon: [TB, D]   bf16
      enc:   [TB, 2L]  f32   (mu | logvar, lane-dense; split in wrapper)
    """
    L = eps_ref.shape[-1]

    # encode(): in-kernel bf16 cast + single fused MXU pass -> [TB, 2L], f32 acc
    x_bf = x_ref[...].astype(jnp.bfloat16)
    enc = jnp.dot(x_bf, wenc_ref[...],
                  preferred_element_type=jnp.float32) + benc_ref[...]
    enc_ref[...] = enc  # lane-dense (2L = 128) store; mu|logvar split in wrapper

    mu = enc[:, :L]
    logvar = enc[:, L:]

    # reparameterize(): z = mu + exp(0.5 * logvar) * eps  (f32 VPU/EUP math)
    z = mu + jnp.exp(0.5 * logvar) * eps_ref[...]

    # decode(): bf16 MXU back to the input dimension, f32 accumulation
    recon = jnp.dot(z.astype(wdec_ref.dtype), wdec_ref[...],
                    preferred_element_type=jnp.float32) + bdec_ref[...]
    recon_ref[...] = recon.astype(recon_ref.dtype)  # bf16 output (halved HBM write)


def _ceil_to(x: int, m: int) -> int:
    return -(-x // m) * m


def _choose_tb(batch: int) -> int:
    """Batch tile rows: multiple of 16, minimal padding for small B,
    128-512 rows with >=2 grid steps (v7x has 2 TensorCores) for large B."""
    if batch <= 128:
        return max(16, _ceil_to(batch, 16))      # tight single tile, <16 pad rows
    tb = _ceil_to(-(-batch // 2), 16)            # ~half the batch per tile
    return min(max(tb, 128), 512)


def prepare_params(params):
    """Fuse + cast weights ONCE (kernel-ready). Do this at init, not per call."""
    return {
        "w_enc": jnp.concatenate([params["w_mu"], params["w_logvar"]],
                                 axis=1).astype(jnp.bfloat16),    # [D, 2L]
        "b_enc": jnp.concatenate([params["b_mu"], params["b_logvar"]],
                                 axis=1).astype(jnp.float32),     # [1, 2L]
        "w_dec": params["w_dec"].astype(jnp.bfloat16),            # [L, D]
        "b_dec": params["b_dec"].astype(jnp.float32),             # [1, D]
    }


def vae_forward(x_nchw, kparams, eps):
    """Flatten NCHW input, pad the batch, and run the fused Pallas VAE forward.

    `kparams` must come from prepare_params (pre-fused / pre-cast weights).
    """
    B = x_nchw.shape[0]
    D = int(x_nchw.shape[1] * x_nchw.shape[2] * x_nchw.shape[3])
    L2 = kparams["w_enc"].shape[1]
    L = L2 // 2

    x = x_nchw.reshape(B, D).astype(jnp.float32)   # torch.flatten(x, 1) equivalent
    eps_f = eps.astype(jnp.float32)                # [B, L]

    TB = _choose_tb(B)
    BP = _ceil_to(B, TB)
    pad = BP - B
    if pad:
        # zero pad keeps padded rows finite through exp(0.5*bias); trimmed below
        x = jnp.pad(x, ((0, pad), (0, 0)))
        eps_f = jnp.pad(eps_f, ((0, pad), (0, 0)))

    # TODO(synk): eps is kept as an input (instead of in-kernel pltpu PRNG) so
    #             the forward stays deterministic and verifiable.
    # TODO(synk): if D grows to realistic image sizes (>=16K), the resident
    #             [D, 2L] encoder weight should be K-tiled over a second grid
    #             axis (v7x VMEM is 64 MiB); unnecessary at D ~ 1K.

    recon, enc = pl.pallas_call(
        _vae_forward_kernel,
        out_shape=(
            jax.ShapeDtypeStruct((BP, D), jnp.bfloat16),   # reconstruction
            jax.ShapeDtypeStruct((BP, L2), jnp.float32),   # mu | logvar
        ),
        grid_spec=pltpu.PrefetchScalarGridSpec(
            num_scalar_prefetch=0,
            grid=(BP // TB,),
            in_specs=[
                pl.BlockSpec((TB, D), lambda i: (i, 0)),   # x batch tile (f32)
                pl.BlockSpec((D, L2), lambda i: (0, 0)),   # fused encoder weight (resident)
                pl.BlockSpec((1, L2), lambda i: (0, 0)),   # fused encoder bias
                pl.BlockSpec((L, D), lambda i: (0, 0)),    # decoder weight (resident)
                pl.BlockSpec((1, D), lambda i: (0, 0)),    # decoder bias
                pl.BlockSpec((TB, L), lambda i: (i, 0)),   # eps batch tile
            ],
            out_specs=[
                pl.BlockSpec((TB, D), lambda i: (i, 0)),
                pl.BlockSpec((TB, L2), lambda i: (i, 0)),
            ],
        ),
        compiler_params=pltpu.CompilerParams(
            dimension_semantics=("parallel",),
        ),
    )(x, kparams["w_enc"], kparams["b_enc"], kparams["w_dec"], kparams["b_dec"],
      eps_f)

    recon = recon[:B]
    mu = enc[:B, :L]
    logvar = enc[:B, L:]
    return recon, mu, logvar


def init_params(key, in_dim, latent_dim):
    """Deterministic synthetic parameter init (no checkpoint loading)."""
    k1, k2, k3 = jax.random.split(key, 3)
    s_in = 1.0 / jnp.sqrt(jnp.float32(in_dim))
    s_lat = 1.0 / jnp.sqrt(jnp.float32(latent_dim))
    return {
        "w_mu":     jax.random.normal(k1, (in_dim, latent_dim), jnp.float32) * s_in,
        "b_mu":     jnp.zeros((1, latent_dim), jnp.float32),
        "w_logvar": jax.random.normal(k2, (in_dim, latent_dim), jnp.float32) * s_in,
        "b_logvar": jnp.zeros((1, latent_dim), jnp.float32),
        "w_dec":    jax.random.normal(k3, (latent_dim, in_dim), jnp.float32) * s_lat,
        "b_dec":    jnp.zeros((1, in_dim), jnp.float32),
    }


# TODO(synk): loss_function / sample / generate are abstract or NotImplemented
#             in BaseVAE and are intentionally not implemented here.

if __name__ == "__main__":
    B, C, H, W = 2, 4, 16, 16
    LATENT = 64
    IN_DIM = C * H * W

    key = jax.random.PRNGKey(0)
    kx, keps, kp = jax.random.split(key, 3)

    x = jax.random.normal(kx, (B, C, H, W), jnp.float32)      # NCHW, like PyTorch
    eps = jax.random.normal(keps, (B, LATENT), jnp.float32)   # reparameterization noise
    params = init_params(kp, IN_DIM, LATENT)
    kparams = prepare_params(params)    # fuse + cast ONCE, outside the call path

    recon, mu, logvar = vae_forward(x, kparams, eps)
    jax.block_until_ready((recon, mu, logvar))

    # Reference in the same precision regime as the kernel (bf16 matmul
    # operands, f32 accumulation) for an apples-to-apples check.
    xb = x.reshape(B, -1).astype(jnp.bfloat16)
    mu_r = jnp.dot(xb, params["w_mu"].astype(jnp.bfloat16),
                   preferred_element_type=jnp.float32) + params["b_mu"]
    lv_r = jnp.dot(xb, params["w_logvar"].astype(jnp.bfloat16),
                   preferred_element_type=jnp.float32) + params["b_logvar"]
    z_r = mu_r + jnp.exp(0.5 * lv_r) * eps
    rec_r = jnp.dot(z_r.astype(jnp.bfloat16), params["w_dec"].astype(jnp.bfloat16),
                    preferred_element_type=jnp.float32) + params["b_dec"]

    assert recon.shape == (B, IN_DIM)
    assert mu.shape == (B, LATENT) and logvar.shape == (B, LATENT)
    assert jnp.allclose(mu, mu_r, atol=5e-2, rtol=5e-2)
    assert jnp.allclose(logvar, lv_r, atol=5e-2, rtol=5e-2)
    assert jnp.allclose(recon.astype(jnp.float32), rec_r, atol=5e-2, rtol=5e-2)

    print("KERNEL_OK")
</pallas_src>

<mosaic_0001>
module attributes {stable_mosaic.version = 11 : i64} {
  func.func @_vae_forward_kernel(%arg0: i32, %arg1: memref<16x1024xf32, #tpu.memory_space<vmem>>, %arg2: memref<1024x128xbf16, #tpu.memory_space<vmem>>, %arg3: memref<1x128xf32, #tpu.memory_space<vmem>>, %arg4: memref<64x1024xbf16, #tpu.memory_space<vmem>>, %arg5: memref<1x1024xf32, #tpu.memory_space<vmem>>, %arg6: memref<16x64xf32, #tpu.memory_space<vmem>>, %arg7: memref<16x1024xbf16, #tpu.memory_space<vmem>>, %arg8: memref<16x128xf32, #tpu.memory_space<vmem>>) attributes {dimension_semantics = [#tpu.dimension_semantics<parallel>], iteration_bounds = array<i64: 1>, scalar_prefetch = 0 : i64, scratch_operands = 0 : i64, tpu.core_type = #tpu.core_type<tc>, window_params = [{transform_indices = @transform_0, window_bounds = array<i64: 16, 1024>}, {pipeline_mode = #tpu.pipeline_mode<synchronous>, transform_indices = @transform_1, window_bounds = array<i64: 1024, 128>}, {pipeline_mode = #tpu.pipeline_mode<synchronous>, transform_indices = @transform_2, window_bounds = array<i64: 1, 128>}, {pipeline_mode = #tpu.pipeline_mode<synchronous>, transform_indices = @transform_3, window_bounds = array<i64: 64, 1024>}, {pipeline_mode = #tpu.pipeline_mode<synchronous>, transform_indices = @transform_4, window_bounds = array<i64: 1, 1024>}, {transform_indices = @transform_5, window_bounds = array<i64: 16, 64>}, {transform_indices = @transform_6, window_bounds = array<i64: 16, 1024>}, {transform_indices = @transform_7, window_bounds = array<i64: 16, 128>}]} {
    %c0 = arith.constant 0 : index
    %c0_0 = arith.constant 0 : index
    %0 = vector.load %arg1[%c0, %c0_0] : memref<16x1024xf32, #tpu.memory_space<vmem>>, vector<16x1024xf32>
    %1 = arith.truncf %0 : vector<16x1024xf32> to vector<16x1024xbf16>
    %c0_1 = arith.constant 0 : index
    %c0_2 = arith.constant 0 : index
    %2 = vector.load %arg2[%c0_1, %c0_2] : memref<1024x128xbf16, #tpu.memory_space<vmem>>, vector<1024x128xbf16>
    %cst = arith.constant dense<0.000000e+00> : vector<16x128xf32>
    %3 = tpu.matmul %1, %2, %cst {dimension_numbers = #tpu.dot_dimension_numbers<[1], [0], [0], [1], [0, 0, 1, 1], [], []>} : vector<16x1024xbf16>, vector<1024x128xbf16>, vector<16x128xf32> -> vector<16x128xf32>
    %c0_3 = arith.constant 0 : index
    %c0_4 = arith.constant 0 : index
    %4 = vector.load %arg3[%c0_3, %c0_4] : memref<1x128xf32, #tpu.memory_space<vmem>>, vector<1x128xf32>
    %5 = vector.broadcast %4 : vector<1x128xf32> to vector<16x128xf32>
    %6 = arith.addf %3, %5 : vector<16x128xf32>
    %c0_5 = arith.constant 0 : index
    %c0_6 = arith.constant 0 : index
    %7 = vector.load %arg8[%c0_5, %c0_6] : memref<16x128xf32, #tpu.memory_space<vmem>>, vector<16x128xf32>
    tpu.vector_store %arg8[%c0_5, %c0_6], %6 {strides = array<i32>} : memref<16x128xf32, #tpu.memory_space<vmem>>, vector<16x128xf32>,
    %8 = vector.extract_strided_slice %6 {offsets = [0, 0], sizes = [16, 64], strides = [1, 1]} : vector<16x128xf32> to vector<16x64xf32>
    %9 = vector.extract_strided_slice %6 {offsets = [0, 64], sizes = [16, 64], strides = [1, 1]} : vector<16x128xf32> to vector<16x64xf32>
    %cst_7 = arith.constant 5.000000e-01 : f32
    %10 = vector.broadcast %cst_7 : f32 to vector<16x64xf32>
    %11 = arith.mulf %10, %9 : vector<16x64xf32>
    %12 = math.exp %11 : vector<16x64xf32>
    %c0_8 = arith.constant 0 : index
    %c0_9 = arith.constant 0 : index
    %13 = vector.load %arg6[%c0_8, %c0_9] : memref<16x64xf32, #tpu.memory_space<vmem>>, vector<16x64xf32>
    %14 = arith.mulf %12, %13 : vector<16x64xf32>
    %15 = arith.addf %8, %14 : vector<16x64xf32>
    %16 = arith.truncf %15 : vector<16x64xf32> to vector<16x64xbf16>
    %c0_10 = arith.constant 0 : index
    %c0_11 = arith.constant 0 : index
    %17 = vector.load %arg4[%c0_10, %c0_11] : memref<64x1024xbf16, #tpu.memory_space<vmem>>, vector<64x1024xbf16>
    %cst_12 = arith.constant dense<0.000000e+00> : vector<16x1024xf32>
    %18 = tpu.matmul %16, %17, %cst_12 {dimension_numbers = #tpu.dot_dimension_numbers<[1], [0], [0], [1], [0, 0, 1, 1], [], []>} : vector<16x64xbf16>, vector<64x1024xbf16>, vector<16x1024xf32> -> vector<16x1024xf32>
    %c0_13 = arith.constant 0 : index
    %c0_14 = arith.constant 0 : index
    %19 = vector.load %arg5[%c0_13, %c0_14] : memref<1x1024xf32, #tpu.memory_space<vmem>>, vector<1x1024xf32>
    %20 = vector.broadcast %19 : vector<1x1024xf32> to vector<16x1024xf32>
    %21 = arith.addf %18, %20 : vector<16x1024xf32>
    %22 = arith.truncf %21 : vector<16x1024xf32> to vector<16x1024xbf16>
    %c0_15 = arith.constant 0 : index
    %c0_16 = arith.constant 0 : index
    %23 = vector.load %arg7[%c0_15, %c0_16] : memref<16x1024xbf16, #tpu.memory_space<vmem>>, vector<16x1024xbf16>
    tpu.vector_store %arg7[%c0_15, %c0_16], %22 {strides = array<i32>} : memref<16x1024xbf16, #tpu.memory_space<vmem>>, vector<16x1024xbf16>,
    return
  }
  func.func @transform_0(%arg0: i32) -> (i32, i32) {
    %c0_i32 = arith.constant 0 : i32
    %c0_i32_0 = arith.constant 0 : i32
    return %arg0, %c0_i32 : i32, i32
  }
  func.func @transform_1(%arg0: i32) -> (i32, i32) {
    %c0_i32 = arith.constant 0 : i32
    %c0_i32_0 = arith.constant 0 : i32
    %c0_i32_1 = arith.constant 0 : i32
    return %c0_i32, %c0_i32_0 : i32, i32
  }
  func.func @transform_2(%arg0: i32) -> (i32, i32) {
    %c0_i32 = arith.constant 0 : i32
    %c0_i32_0 = arith.constant 0 : i32
    %c0_i32_1 = arith.constant 0 : i32
    return %c0_i32, %c0_i32_0 : i32, i32
  }
  func.func @transform_3(%arg0: i32) -> (i32, i32) {
    %c0_i32 = arith.constant 0 : i32
    %c0_i32_0 = arith.constant 0 : i32
    %c0_i32_1 = arith.constant 0 : i32
    return %c0_i32, %c0_i32_0 : i32, i32
  }
  func.func @transform_4(%arg0: i32) -> (i32, i32) {
    %c0_i32 = arith.constant 0 : i32
    %c0_i32_0 = arith.constant 0 : i32
    %c0_i32_1 = arith.constant 0 : i32
    return %c0_i32, %c0_i32_0 : i32, i32
  }
  func.func @transform_5(%arg0: i32) -> (i32, i32) {
    %c0_i32 = arith.constant 0 : i32
    %c0_i32_0 = arith.constant 0 : i32
    return %arg0, %c0_i32 : i32, i32
  }
  func.func @transform_6(%arg0: i32) -> (i32, i32) {
    %c0_i32 = arith.constant 0 : i32
    %c0_i32_0 = arith.constant 0 : i32
    return %arg0, %c0_i32 : i32, i32
  }
  func.func @transform_7(%arg0: i32) -> (i32, i32) {
    %c0_i32 = arith.constant 0 : i32
    %c0_i32_0 = arith.constant 0 : i32
    return %arg0, %c0_i32 : i32, i32
  }
}

</mosaic_0001>

<llo_original>
// kernel: tpu_custom_call.1
$region0: #{tpu_custom_call.1}
  #allocation0 [shape = 'u32[]', space=smem, size = 0x4, offset = 0x4, fixed_abs, tag = 'smem constant byte address 0x4 - core index']
  #allocation1 [shape = 'u32[144,128]{1,0:T(1,128)}', space=vmem, size = 0x12000, scoped, tag = 'internal scratch']
  %s0 = inlined_call_operand.hbm [shape: f32[16,1024], index: 0, kind: input, shape index: {}]
  %s1 = inlined_call_operand.hbm [shape: bf16[1024,128], index: 1, kind: input, shape index: {}]
  %s2 = inlined_call_operand.vmem [shape: f32[1,128], index: 2, kind: input, shape index: {}]
  %s3 = inlined_call_operand.hbm [shape: bf16[64,1024], index: 3, kind: input, shape index: {}]
  %s4 = inlined_call_operand.hbm [shape: f32[1,1024], index: 4, kind: input, shape index: {}]
  %s5 = inlined_call_operand.vmem [shape: f32[16,64], index: 5, kind: input, shape index: {}]
  %s6 = inlined_call_operand.hbm [shape: bf16[16,1024], index: 6, kind: output, shape index: {0}]
  %s7 = inlined_call_operand.hbm [shape: f32[16,128], index: 7, kind: output, shape index: {1}]
  %8 = xla_tuple %s6, %s7
  %s9 = sld [smem:[#allocation0]]
  $region58: #{tpu_custom_call.1} parent=0
    _
  %s11 = ssub.s32 1, %s9
  %s12 = scalar_select 0, %s11, %s9
  $region1: #{tpu_custom_call.1} parent=0
    #allocation2 [shape = 'u8[65536]{0}', space=vmem, size = 0x10000, scoped, tag = 'input window, operand 0, single buffered']
    #allocation3 [shape = 's32[1]{0}', space=sflag, size = 0x4, scoped, tag = 'scoped memory for tpu_custom_call.1']
    #allocation4 [shape = 's32[1]{0}', space=sflag, size = 0x4, scoped, tag = 'scoped memory for tpu_custom_call.1']
    #allocation5 [shape = 'u8[262144]{0}', space=vmem, size = 0x40000, scoped, tag = 'input window, operand 1, single buffered']
    #allocation6 [shape = 's32[1]{0}', space=sflag, size = 0x4, scoped, tag = 'scoped memory for tpu_custom_call.1']
    #allocation7 [shape = 'u8[131072]{0}', space=vmem, size = 0x20000, scoped, tag = 'input window, operand 3, single buffered']
    #allocation8 [shape = 'u8[4096]{0}', space=vmem, size = 0x1000, scoped, tag = 'input window, operand 4, single buffered']
    #allocation9 [shape = 's32[1]{0}', space=sflag, size = 0x4, scoped, tag = 'scoped memory for tpu_custom_call.1']
    #allocation10 [shape = 'u8[32768]{0}', space=vmem, size = 0x8000, scoped, tag = 'output window, operand 0, single buffered']
    #allocation11 [shape = 'u8[8192]{0}', space=vmem, size = 0x2000, scoped, tag = 'output window, operand 1, single buffered']
    #allocation12 [shape = 's32[1]{0}', space=sflag, size = 0x4, scoped, tag = 'scoped memory for tpu_custom_call.1']
    %13 = vsyncpa [#allocation3], 0
    %14 = vsyncpa [#allocation6], 0
    %15 = vsyncpa [#allocation9], 0
    %16 = vsyncpa [#allocation4], 0
    %17 = vsyncpa [#allocation12], 0
    // Predicated region
    $region2: #{tpu_custom_call.1} parent=1 // pred_check
      _
    $region3: #{tpu_custom_call.1} parent=1 // pred_check_branch
      %19 = sbr.rel (0) target = $region5
    $region4: #{tpu_custom_call.1} parent=1 // pred_region
      %s21 = ssub.s32 2048, 2048
      %22 = vsyncadd [#allocation3], %s21
      %s23 = sshll.u32 [#allocation2], 4
      %s24 = int_to_ptr.vmem [resolvable:$true] %s23
      %29 = dma.hbm_to_vmem [thread:$0]  %s0, 2048, %s24, [#allocation3], 1024, 1024, 64
    $region5: #{tpu_custom_call.1} parent=1 // pred_fallthru
      _
    // Predicated region
    $region6: #{tpu_custom_call.1} parent=1 // pred_check
      _
    $region7: #{tpu_custom_call.1} parent=1 // pred_check_branch
      %31 = sbr.rel (0) target = $region9
    $region8: #{tpu_custom_call.1} parent=1 // pred_region
      %s33 = ssub.s32 8192, 8192
      %34 = vsyncadd [#allocation6], %s33
      %s35 = sshll.u32 [#allocation5], 4
      %s36 = int_to_ptr.vmem [resolvable:$true] %s35
      %41 = dma.hbm_to_vmem [thread:$0]  %s1, 8192, %s36, [#allocation6], 64, 64, 4
    $region9: #{tpu_custom_call.1} parent=1 // pred_fallthru
      _
    // Predicated region
    $region10: #{tpu_custom_call.1} parent=1 // pred_check
      _
    $region11: #{tpu_custom_call.1} parent=1 // pred_check_branch
      %43 = sbr.rel (0) target = $region13
    $region12: #{tpu_custom_call.1} parent=1 // pred_region
      _
    $region13: #{tpu_custom_call.1} parent=1 // pred_fallthru
      _
    // Predicated region
    $region14: #{tpu_custom_call.1} parent=1 // pred_check
      _
    $region15: #{tpu_custom_call.1} parent=1 // pred_check_branch
      %45 = sbr.rel (0) target = $region17
    $region16: #{tpu_custom_call.1} parent=1 // pred_region
      %s47 = ssub.s32 4096, 4096
      %48 = vsyncadd [#allocation6], %s47
      %s49 = sshll.u32 [#allocation7], 4
      %s50 = int_to_ptr.vmem [resolvable:$true] %s49
      %55 = dma.hbm_to_vmem [thread:$0]  %s3, 4096, %s50, [#allocation6], 512, 512, 32
    $region17: #{tpu_custom_call.1} parent=1 // pred_fallthru
      _
    // Predicated region
    $region18: #{tpu_custom_call.1} parent=1 // pred_check
      _
    $region19: #{tpu_custom_call.1} parent=1 // pred_check_branch
      %57 = sbr.rel (0) target = $region21
    $region20: #{tpu_custom_call.1} parent=1 // pred_region
      %s59 = ssub.s32 128, 128
      %60 = vsyncadd [#allocation9], %s59
      %s62 = sshll.u32 [#allocation8], 4
      %s63 = int_to_ptr.vmem [resolvable:$true] %s62
      %65 = dma.hbm_to_vmem [thread:$0]  %s4, 128, %s63, [#allocation9]
    $region21: #{tpu_custom_call.1} parent=1 // pred_fallthru
      _
    // Predicated region
    $region22: #{tpu_custom_call.1} parent=1 // pred_check
      _
    $region23: #{tpu_custom_call.1} parent=1 // pred_check_branch
      %67 = sbr.rel (0) target = $region25
    $region24: #{tpu_custom_call.1} parent=1 // pred_region
      _
    $region25: #{tpu_custom_call.1} parent=1 // pred_fallthru
      _
    // Predicated region
    $region26: #{tpu_custom_call.1} parent=1 // pred_check
      _
    $region27: #{tpu_custom_call.1} parent=1 // pred_check_branch
      %69 = sbr.rel (0) target = $region29
    $region28: #{tpu_custom_call.1} parent=1 // pred_region
      %70 = dma.done [#allocation3], 2048
    $region29: #{tpu_custom_call.1} parent=1 // pred_fallthru
      _
    // Predicated region
    $region30: #{tpu_custom_call.1} parent=1 // pred_check
      _
    $region31: #{tpu_custom_call.1} parent=1 // pred_check_branch
      %72 = sbr.rel (0) target = $region33
    $region32: #{tpu_custom_call.1} parent=1 // pred_region
      %73 = dma.done [#allocation6], 8192
    $region33: #{tpu_custom_call.1} parent=1 // pred_fallthru
      _
    // Predicated region
    $region34: #{tpu_custom_call.1} parent=1 // pred_check
      _
    $region35: #{tpu_custom_call.1} parent=1 // pred_check_branch
      %75 = sbr.rel (0) target = $region37
    $region36: #{tpu_custom_call.1} parent=1 // pred_region
      %76 = dma.done [#allocation6], 4096
    $region37: #{tpu_custom_call.1} parent=1 // pred_fallthru
      _
    // Predicated region
    $region38: #{tpu_custom_call.1} parent=1 // pred_check
      _
    $region39: #{tpu_custom_call.1} parent=1 // pred_check_branch
      %78 = sbr.rel (0) target = $region41
    $region40: #{tpu_custom_call.1} parent=1 // pred_region
      %79 = dma.done [#allocation9], 128
    $region41: #{tpu_custom_call.1} parent=1 // pred_fallthru
      _
    %v81 = vld [vmem:[#allocation2] sm:$0xff]
    %v82 = vld [vmem:[#allocation2 + $0x8] sm:$0xff]
    %v83 = vld [vmem:[#allocation2 + $0x10] sm:$0xff]
    %v84 = vld [vmem:[#allocation2 + $0x18] sm:$0xff]
    %v85 = vld [vmem:[#allocation2 + $0x20] sm:$0xff]
    %v86 = vld [vmem:[#allocation2 + $0x28] sm:$0xff]
    %v87 = vld [vmem:[#allocation2 + $0x30] sm:$0xff]
    %v88 = vld [vmem:[#allocation2 + $0x38] sm:$0xff]
    %v89 = vld [vmem:[#allocation2 + $0x40] sm:$0xff]
    %v90 = vld [vmem:[#allocation2 + $0x48] sm:$0xff]
    %v91 = vld [vmem:[#allocation2 + $0x50] sm:$0xff]
    %v92 = vld [vmem:[#allocation2 + $0x58] sm:$0xff]
    %v93 = vld [vmem:[#allocation2 + $0x60] sm:$0xff]
    %v94 = vld [vmem:[#allocation2 + $0x68] sm:$0xff]
    %v95 = vld [vmem:[#allocation2 + $0x70] sm:$0xff]
    %v96 = vld [vmem:[#allocation2 + $0x78] sm:$0xff]
    %v97 = vpack.c.bf16 %v89, %v81
    %v98 = vpack.c.bf16 %v90, %v82
    %v99 = vpack.c.bf16 %v91, %v83
    %v100 = vpack.c.bf16 %v92, %v84
    %v101 = vpack.c.bf16 %v93, %v85
    %v102 = vpack.c.bf16 %v94, %v86
    %v103 = vpack.c.bf16 %v95, %v87
    %v104 = vpack.c.bf16 %v96, %v88
    %v105 = vld [vmem:[#allocation5] sm:$0xf]
    %v106 = vld [vmem:[#allocation5 + $0x4] sm:$0xf]
    %v107 = vld [vmem:[#allocation5 + $0x8] sm:$0xf]
    %v108 = vld [vmem:[#allocation5 + $0xc] sm:$0xf]
    %v109 = vld [vmem:[#allocation5 + $0x10] sm:$0xf]
    %v110 = vld [vmem:[#allocation5 + $0x14] sm:$0xf]
    %v111 = vld [vmem:[#allocation5 + $0x18] sm:$0xf]
    %v112 = vld [vmem:[#allocation5 + $0x1c] sm:$0xf]
    %v113 = vld [vmem:[#allocation5 + $0x20] sm:$0xf]
    %v114 = vld [vmem:[#allocation5 + $0x24] sm:$0xf]
    %v115 = vld [vmem:[#allocation5 + $0x28] sm:$0xf]
    %v116 = vld [vmem:[#allocation5 + $0x2c] sm:$0xf]
    %v117 = vld [vmem:[#allocation5 + $0x30] sm:$0xf]
    %v118 = vld [vmem:[#allocation5 + $0x34] sm:$0xf]
    %v119 = vld [vmem:[#allocation5 + $0x38] sm:$0xf]
    %v120 = vld [vmem:[#allocation5 + $0x3c] sm:$0xf]
    %v121 = vld [vmem:[#allocation5 + $0x40] sm:$0xf]
    %v122 = vld [vmem:[#allocation5 + $0x44] sm:$0xf]
    %v123 = vld [vmem:[#allocation5 + $0x48] sm:$0xf]
    %v124 = vld [vmem:[#allocation5 + $0x4c] sm:$0xf]
    %v125 = vld [vmem:[#allocation5 + $0x50] sm:$0xf]
    %v126 = vld [vmem:[#allocation5 + $0x54] sm:$0xf]
    %v127 = vld [vmem:[#allocation5 + $0x58] sm:$0xf]
    %v128 = vld [vmem:[#allocation5 + $0x5c] sm:$0xf]
    %v129 = vld [vmem:[#allocation5 + $0x60] sm:$0xf]
    %v130 = vld [vmem:[#allocation5 + $0x64] sm:$0xf]
    %v131 = vld [vmem:[#allocation5 + $0x68] sm:$0xf]
    %v132 = vld [vmem:[#allocation5 + $0x6c] sm:$0xf]
    %v133 = vld [vmem:[#allocation5 + $0x70] sm:$0xf]
    %v134 = vld [vmem:[#allocation5 + $0x74] sm:$0xf]
    %v135 = vld [vmem:[#allocation5 + $0x78] sm:$0xf]
    %v136 = vld [vmem:[#allocation5 + $0x7c] sm:$0xf]
    %v137 = vld [vmem:[#allocation5 + $0x80] sm:$0xf]
    %v138 = vld [vmem:[#allocation5 + $0x84] sm:$0xf]
    %v139 = vld [vmem:[#allocation5 + $0x88] sm:$0xf]
    %v140 = vld [vmem:[#allocation5 + $0x8c] sm:$0xf]
    %v141 = vld [vmem:[#allocation5 + $0x90] sm:$0xf]
    %v142 = vld [vmem:[#allocation5 + $0x94] sm:$0xf]
    %v143 = vld [vmem:[#allocation5 + $0x98] sm:$0xf]
    %v144 = vld [vmem:[#allocation5 + $0x9c] sm:$0xf]
    %v145 = vld [vmem:[#allocation5 + $0xa0] sm:$0xf]
    %v146 = vld [vmem:[#allocation5 + $0xa4] sm:$0xf]
    %v147 = vld [vmem:[#allocation5 + $0xa8] sm:$0xf]
    %v148 = vld [vmem:[#allocation5 + $0xac] sm:$0xf]
    %v149 = vld [vmem:[#allocation5 + $0xb0] sm:$0xf]
    %v150 = vld [vmem:[#allocation5 + $0xb4] sm:$0xf]
    %v151 = vld [vmem:[#allocation5 + $0xb8] sm:$0xf]
    %v152 = vld [vmem:[#allocation5 + $0xbc] sm:$0xf]
    %v153 = vld [vmem:[#allocation5 + $0xc0] sm:$0xf]
    %v154 = vld [vmem:[#allocation5 + $0xc4] sm:$0xf]
    %v155 = vld [vmem:[#allocation5 + $0xc8] sm:$0xf]
    %v156 = vld [vmem:[#allocation5 + $0xcc] sm:$0xf]
    %v157 = vld [vmem:[#allocation5 + $0xd0] sm:$0xf]
    %v158 = vld [vmem:[#allocation5 + $0xd4] sm:$0xf]
    %v159 = vld [vmem:[#allocation5 + $0xd8] sm:$0xf]
    %v160 = vld [vmem:[#allocation5 + $0xdc] sm:$0xf]
    %v161 = vld [vmem:[#allocation5 + $0xe0] sm:$0xf]
    %v162 = vld [vmem:[#allocation5 + $0xe4] sm:$0xf]
    %v163 = vld [vmem:[#allocation5 + $0xe8] sm:$0xf]
    %v164 = vld [vmem:[#allocation5 + $0xec] sm:$0xf]
    %v165 = vld [vmem:[#allocation5 + $0xf0] sm:$0xf]
    %v166 = vld [vmem:[#allocation5 + $0xf4] sm:$0xf]
    %v167 = vld [vmem:[#allocation5 + $0xf8] sm:$0xf]
    %v168 = vld [vmem:[#allocation5 + $0xfc] sm:$0xf]
    %v169 = vld [vmem:[#allocation5 + $0x100] sm:$0xf]
    %v170 = vld [vmem:[#allocation5 + $0x104] sm:$0xf]
    %v171 = vld [vmem:[#allocation5 + $0x108] sm:$0xf]
    %v172 = vld [vmem:[#allocation5 + $0x10c] sm:$0xf]
    %v173 = vld [vmem:[#allocation5 + $0x110] sm:$0xf]
    %v174 = vld [vmem:[#allocation5 + $0x114] sm:$0xf]
    %v175 = vld [vmem:[#allocation5 + $0x118] sm:$0xf]
    %v176 = vld [vmem:[#allocation5 + $0x11c] sm:$0xf]
    %v177 = vld [vmem:[#allocation5 + $0x120] sm:$0xf]
    %v178 = vld [vmem:[#allocation5 + $0x124] sm:$0xf]
    %v179 = vld [vmem:[#allocation5 + $0x128] sm:$0xf]
    %v180 = vld [vmem:[#allocation5 + $0x12c] sm:$0xf]
    %v181 = vld [vmem:[#allocation5 + $0x130] sm:$0xf]
    %v182 = vld [vmem:[#allocation5 + $0x134] sm:$0xf]
    %v183 = vld [vmem:[#allocation5 + $0x138] sm:$0xf]
    %v184 = vld [vmem:[#allocation5 + $0x13c] sm:$0xf]
    %v185 = vld [vmem:[#allocation5 + $0x140] sm:$0xf]
    %v186 = vld [vmem:[#allocation5 + $0x144] sm:$0xf]
    %v187 = vld [vmem:[#allocation5 + $0x148] sm:$0xf]
    %v188 = vld [vmem:[#allocation5 + $0x14c] sm:$0xf]
    %v189 = vld [vmem:[#allocation5 + $0x150] sm:$0xf]
    %v190 = vld [vmem:[#allocation5 + $0x154] sm:$0xf]
    %v191 = vld [vmem:[#allocation5 + $0x158] sm:$0xf]
    %v192 = vld [vmem:[#allocation5 + $0x15c] sm:$0xf]
    %v193 = vld [vmem:[#allocation5 + $0x160] sm:$0xf]
    %v194 = vld [vmem:[#allocation5 + $0x164] sm:$0xf]
    %v195 = vld [vmem:[#allocation5 + $0x168] sm:$0xf]
    %v196 = vld [vmem:[#allocation5 + $0x16c] sm:$0xf]
    %v197 = vld [vmem:[#allocation5 + $0x170] sm:$0xf]
    %v198 = vld [vmem:[#allocation5 + $0x174] sm:$0xf]
    %v199 = vld [vmem:[#allocation5 + $0x178] sm:$0xf]
    %v200 = vld [vmem:[#allocation5 + $0x17c] sm:$0xf]
    %v201 = vld [vmem:[#allocation5 + $0x180] sm:$0xf]
    %v202 = vld [vmem:[#allocation5 + $0x184] sm:$0xf]
    %v203 = vld [vmem:[#allocation5 + $0x188] sm:$0xf]
    %v204 = vld [vmem:[#allocation5 + $0x18c] sm:$0xf]
    %v205 = vld [vmem:[#allocation5 + $0x190] sm:$0xf]
    %v206 = vld [vmem:[#allocation5 + $0x194] sm:$0xf]
    %v207 = vld [vmem:[#allocation5 + $0x198] sm:$0xf]
    %v208 = vld [vmem:[#allocation5 + $0x19c] sm:$0xf]
    %v209 = vld [vmem:[#allocation5 + $0x1a0] sm:$0xf]
    %v210 = vld [vmem:[#allocation5 + $0x1a4] sm:$0xf]
    %v211 = vld [vmem:[#allocation5 + $0x1a8] sm:$0xf]
    %v212 = vld [vmem:[#allocation5 + $0x1ac] sm:$0xf]
    %v213 = vld [vmem:[#allocation5 + $0x1b0] sm:$0xf]
    %v214 = vld [vmem:[#allocation5 + $0x1b4] sm:$0xf]
    %v215 = vld [vmem:[#allocation5 + $0x1b8] sm:$0xf]
    %v216 = vld [vmem:[#allocation5 + $0x1bc] sm:$0xf]
    %v217 = vld [vmem:[#allocation5 + $0x1c0] sm:$0xf]
    %v218 = vld [vmem:[#allocation5 + $0x1c4] sm:$0xf]
    %v219 = vld [vmem:[#allocation5 + $0x1c8] sm:$0xf]
    %v220 = vld [vmem:[#allocation5 + $0x1cc] sm:$0xf]
    %v221 = vld [vmem:[#allocation5 + $0x1d0] sm:$0xf]
    %v222 = vld [vmem:[#allocation5 + $0x1d4] sm:$0xf]
    %v223 = vld [vmem:[#allocation5 + $0x1d8] sm:$0xf]
    %v224 = vld [vmem:[#allocation5 + $0x1dc] sm:$0xf]
    %v225 = vld [vmem:[#allocation5 + $0x1e0] sm:$0xf]
    %v226 = vld [vmem:[#allocation5 + $0x1e4] sm:$0xf]
    %v227 = vld [vmem:[#allocation5 + $0x1e8] sm:$0xf]
    %v228 = vld [vmem:[#allocation5 + $0x1ec] sm:$0xf]
    %v229 = vld [vmem:[#allocation5 + $0x1f0] sm:$0xf]
    %v230 = vld [vmem:[#allocation5 + $0x1f4] sm:$0xf]
    %v231 = vld [vmem:[#allocation5 + $0x1f8] sm:$0xf]
    %v232 = vld [vmem:[#allocation5 + $0x1fc] sm:$0xf]
    %v233 = vld [vmem:[%s2] sm:$0x1]
    %v235 = vlaneseq
    %v236 = vshrl.u32 %v235, 7
    %v237 = vsub.s32 0, %v236
    %v238 = vrot.slane %v233, %v237
    %v368 = vunpack.c.l.b16 %v105
    %v369 = vunpack.c.l.b16 %v106
    %v370 = vunpack.c.l.b16 %v107
    %v371 = vunpack.c.l.b16 %v108
    %v372 = vunpack.c.l.b16 %v109
    %v373 = vunpack.c.l.b16 %v110
    %v374 = vunpack.c.l.b16 %v111
    %v375 = vunpack.c.l.b16 %v112
    %v376 = vunpack.c.l.b16 %v113
    %v377 = vunpack.c.l.b16 %v114
    %v378 = vunpack.c.l.b16 %v115
    %v379 = vunpack.c.l.b16 %v116
    %v380 = vunpack.c.l.b16 %v117
    %v381 = vunpack.c.l.b16 %v118
    %v382 = vunpack.c.l.b16 %v119
    %v383 = vunpack.c.l.b16 %v120
    %v384 = vunpack.c.l.b16 %v121
    %v385 = vunpack.c.l.b16 %v122
    %v386 = vunpack.c.l.b16 %v123
    %v387 = vunpack.c.l.b16 %v124
    %v388 = vunpack.c.l.b16 %v125
    %v389 = vunpack.c.l.b16 %v126
    %v390 = vunpack.c.l.b16 %v127
    %v391 = vunpack.c.l.b16 %v128
    %v392 = vunpack.c.l.b16 %v129
    %v393 = vunpack.c.l.b16 %v130
    %v394 = vunpack.c.l.b16 %v131
    %v395 = vunpack.c.l.b16 %v132
    %v396 = vunpack.c.l.b16 %v133
    %v397 = vunpack.c.l.b16 %v134
    %v398 = vunpack.c.l.b16 %v135
    %v399 = vunpack.c.l.b16 %v136
    %v400 = vunpack.c.l.b16 %v137
    %v401 = vunpack.c.l.b16 %v138
    %v402 = vunpack.c.l.b16 %v139
    %v403 = vunpack.c.l.b16 %v140
    %v404 = vunpack.c.l.b16 %v141
    %v405 = vunpack.c.l.b16 %v142
    %v406 = vunpack.c.l.b16 %v143
    %v407 = vunpack.c.l.b16 %v144
    %v408 = vunpack.c.l.b16 %v145
    %v409 = vunpack.c.l.b16 %v146
    %v410 = vunpack.c.l.b16 %v147
    %v411 = vunpack.c.l.b16 %v148
    %v412 = vunpack.c.l.b16 %v149
    %v413 = vunpack.c.l.b16 %v150
    %v414 = vunpack.c.l.b16 %v151
    %v415 = vunpack.c.l.b16 %v152
    %v416 = vunpack.c.l.b16 %v153
    %v417 = vunpack.c.l.b16 %v154
    %v418 = vunpack.c.l.b16 %v155
    %v419 = vunpack.c.l.b16 %v156
    %v420 = vunpack.c.l.b16 %v157
    %v421 = vunpack.c.l.b16 %v158
    %v422 = vunpack.c.l.b16 %v159
    %v423 = vunpack.c.l.b16 %v160
    %v424 = vunpack.c.l.b16 %v161
    %v425 = vunpack.c.l.b16 %v162
    %v426 = vunpack.c.l.b16 %v163
    %v427 = vunpack.c.l.b16 %v164
    %v428 = vunpack.c.l.b16 %v165
    %v429 = vunpack.c.l.b16 %v166
    %v430 = vunpack.c.l.b16 %v167
    %v431 = vunpack.c.l.b16 %v168
    %v432 = vunpack.c.l.b16 %v169
    %v433 = vunpack.c.l.b16 %v170
    %v434 = vunpack.c.l.b16 %v171
    %v435 = vunpack.c.l.b16 %v172
    %v436 = vunpack.c.l.b16 %v173
    %v437 = vunpack.c.l.b16 %v174
    %v438 = vunpack.c.l.b16 %v175
    %v439 = vunpack.c.l.b16 %v176
    %v440 = vunpack.c.l.b16 %v177
    %v441 = vunpack.c.l.b16 %v178
    %v442 = vunpack.c.l.b16 %v179
    %v443 = vunpack.c.l.b16 %v180
    %v444 = vunpack.c.l.b16 %v181
    %v445 = vunpack.c.l.b16 %v182
    %v446 = vunpack.c.l.b16 %v183
    %v447 = vunpack.c.l.b16 %v184
    %v448 = vunpack.c.l.b16 %v185
    %v449 = vunpack.c.l.b16 %v186
    %v450 = vunpack.c.l.b16 %v187
    %v451 = vunpack.c.l.b16 %v188
    %v452 = vunpack.c.l.b16 %v189
    %v453 = vunpack.c.l.b16 %v190
    %v454 = vunpack.c.l.b16 %v191
    %v455 = vunpack.c.l.b16 %v192
    %v456 = vunpack.c.l.b16 %v193
    %v457 = vunpack.c.l.b16 %v194
    %v458 = vunpack.c.l.b16 %v195
    %v459 = vunpack.c.l.b16 %v196
    %v460 = vunpack.c.l.b16 %v197
    %v461 = vunpack.c.l.b16 %v198
    %v462 = vunpack.c.l.b16 %v199
    %v463 = vunpack.c.l.b16 %v200
    %v464 = vunpack.c.l.b16 %v201
    %v465 = vunpack.c.l.b16 %v202
    %v466 = vunpack.c.l.b16 %v203
    %v467 = vunpack.c.l.b16 %v204
    %v468 = vunpack.c.l.b16 %v205
    %v469 = vunpack.c.l.b16 %v206
    %v470 = vunpack.c.l.b16 %v207
    %v471 = vunpack.c.l.b16 %v208
    %v472 = vunpack.c.l.b16 %v209
    %v473 = vunpack.c.l.b16 %v210
    %v474 = vunpack.c.l.b16 %v211
    %v475 = vunpack.c.l.b16 %v212
    %v476 = vunpack.c.l.b16 %v213
    %v477 = vunpack.c.l.b16 %v214
    %v478 = vunpack.c.l.b16 %v215
    %v479 = vunpack.c.l.b16 %v216
    %v480 = vunpack.c.l.b16 %v217
    %v481 = vunpack.c.l.b16 %v218
    %v482 = vunpack.c.l.b16 %v219
    %v483 = vunpack.c.l.b16 %v220
    %v484 = vunpack.c.l.b16 %v221
    %v485 = vunpack.c.l.b16 %v222
    %v486 = vunpack.c.l.b16 %v223
    %v487 = vunpack.c.l.b16 %v224
    %v488 = vunpack.c.l.b16 %v225
    %v489 = vunpack.c.l.b16 %v226
    %v490 = vunpack.c.l.b16 %v227
    %v491 = vunpack.c.l.b16 %v228
    %v492 = vunpack.c.l.b16 %v229
    %v493 = vunpack.c.l.b16 %v230
    %v494 = vunpack.c.l.b16 %v231
    %v495 = vunpack.c.l.b16 %v232
    %v496 = vpack.c.b16 %v369, %v368
    %v497 = vpack.c.b16 %v371, %v370
    %v498 = vpack.c.b16 %v373, %v372
    %v499 = vpack.c.b16 %v375, %v374
    %v500 = vpack.c.b16 %v377, %v376
    %v501 = vpack.c.b16 %v379, %v378
    %v502 = vpack.c.b16 %v381, %v380
    %v503 = vpack.c.b16 %v383, %v382
    %v504 = vpack.c.b16 %v385, %v384
    %v505 = vpack.c.b16 %v387, %v386
    %v506 = vpack.c.b16 %v389, %v388
    %v507 = vpack.c.b16 %v391, %v390
    %v508 = vpack.c.b16 %v393, %v392
    %v509 = vpack.c.b16 %v395, %v394
    %v510 = vpack.c.b16 %v397, %v396
    %v511 = vpack.c.b16 %v399, %v398
    %v512 = vpack.c.b16 %v401, %v400
    %v513 = vpack.c.b16 %v403, %v402
    %v514 = vpack.c.b16 %v405, %v404
    %v515 = vpack.c.b16 %v407, %v406
    %v516 = vpack.c.b16 %v409, %v408
    %v517 = vpack.c.b16 %v411, %v410
    %v518 = vpack.c.b16 %v413, %v412
    %v519 = vpack.c.b16 %v415, %v414
    %v520 = vpack.c.b16 %v417, %v416
    %v521 = vpack.c.b16 %v419, %v418
    %v522 = vpack.c.b16 %v421, %v420
    %v523 = vpack.c.b16 %v423, %v422
    %v524 = vpack.c.b16 %v425, %v424
    %v525 = vpack.c.b16 %v427, %v426
    %v526 = vpack.c.b16 %v429, %v428
    %v527 = vpack.c.b16 %v431, %v430
    %v528 = vpack.c.b16 %v433, %v432
    %v529 = vpack.c.b16 %v435, %v434
    %v530 = vpack.c.b16 %v437, %v436
    %v531 = vpack.c.b16 %v439, %v438
    %v532 = vpack.c.b16 %v441, %v440
    %v533 = vpack.c.b16 %v443, %v442
    %v534 = vpack.c.b16 %v445, %v444
    %v535 = vpack.c.b16 %v447, %v446
    %v536 = vpack.c.b16 %v449, %v448
    %v537 = vpack.c.b16 %v451, %v450
    %v538 = vpack.c.b16 %v453, %v452
    %v539 = vpack.c.b16 %v455, %v454
    %v540 = vpack.c.b16 %v457, %v456
    %v541 = vpack.c.b16 %v459, %v458
    %v542 = vpack.c.b16 %v461, %v460
    %v543 = vpack.c.b16 %v463, %v462
    %v544 = vpack.c.b16 %v465, %v464
    %v545 = vpack.c.b16 %v467, %v466
    %v546 = vpack.c.b16 %v469, %v468
    %v547 = vpack.c.b16 %v471, %v470
    %v548 = vpack.c.b16 %v473, %v472
    %v549 = vpack.c.b16 %v475, %v474
    %v550 = vpack.c.b16 %v477, %v476
    %v551 = vpack.c.b16 %v479, %v478
    %v552 = vpack.c.b16 %v481, %v480
    %v553 = vpack.c.b16 %v483, %v482
    %v554 = vpack.c.b16 %v485, %v484
    %v555 = vpack.c.b16 %v487, %v486
    %v556 = vpack.c.b16 %v489, %v488
    %v557 = vpack.c.b16 %v491, %v490
    %v558 = vpack.c.b16 %v493, %v492
    %v559 = vpack.c.b16 %v495, %v494
    %624 = vmatprep.subr.bf16.mxu0 0
    %625 = vmatpush1.bf16.msra.mxu0 %v496
    %626 = vmatprep.subr.bf16.mxu0 0
    %627 = vmatpush1.bf16.msra.mxu0 %v497
    %628 = vmatprep.subr.bf16.mxu0 0
    %629 = vmatpush1.bf16.msra.mxu0 %v498
    %630 = vmatprep.subr.bf16.mxu0 0
    %631 = vmatpush1.bf16.msra.mxu0 %v499
    %632 = vmatprep.subr.bf16.mxu0 0
    %633 = vmatpush1.bf16.msra.mxu0 %v500
    %634 = vmatprep.subr.bf16.mxu0 0
    %635 = vmatpush1.bf16.msra.mxu0 %v501
    %636 = vmatprep.subr.bf16.mxu0 0
    %637 = vmatpush1.bf16.msra.mxu0 %v502
    %638 = vmatprep.subr.bf16.mxu0 0
    %639 = vmatpush1.bf16.msra.mxu0 %v503
    %640 = vmatprep.subr.bf16.mxu0 0
    %641 = vmatpush1.bf16.msra.mxu0 %v504
    %642 = vmatprep.subr.bf16.mxu0 0
    %643 = vmatpush1.bf16.msra.mxu0 %v505
    %644 = vmatprep.subr.bf16.mxu0 0
    %645 = vmatpush1.bf16.msra.mxu0 %v506
    %646 = vmatprep.subr.bf16.mxu0 0
    %647 = vmatpush1.bf16.msra.mxu0 %v507
    %648 = vmatprep.subr.bf16.mxu0 0
    %649 = vmatpush1.bf16.msra.mxu0 %v508
    %650 = vmatprep.subr.bf16.mxu0 0
    %651 = vmatpush1.bf16.msra.mxu0 %v509
    %652 = vmatprep.subr.bf16.mxu0 0
    %653 = vmatpush1.bf16.msra.mxu0 %v510
    %654 = vmatprep.subr.bf16.mxu0 0
    %655 = vmatpush1.bf16.msra.mxu0 %v511
    %656 = vmatprep.mubr.bf16.mxu0 %v98
    %657 = vmatmul.mubr.bf16.gmra.mrb[0].mxu0 %v97
    %v658 = vpop.f32.mrb[0].mxu0
    %v659 = vadd.f32 %v238, %v658
    %v660 = vpop.f32.mrb[0].mxu0
    %v661 = vpop.f32.mrb[0].mxu0
    %v662 = vadd.f32 %v238, %v661
    %v663 = vpop.f32.mrb[0].mxu0
    %664 = vdwg.mxu0
    %665 = vmatprep.subr.bf16.mxu0 0
    %666 = vmatpush1.bf16.msra.mxu0 %v512
    %667 = vmatprep.subr.bf16.mxu0 0
    %668 = vmatpush1.bf16.msra.mxu0 %v513
    %669 = vmatprep.subr.bf16.mxu0 0
    %670 = vmatpush1.bf16.msra.mxu0 %v514
    %671 = vmatprep.subr.bf16.mxu0 0
    %672 = vmatpush1.bf16.msra.mxu0 %v515
    %673 = vmatprep.subr.bf16.mxu0 0
    %674 = vmatpush1.bf16.msra.mxu0 %v516
    %675 = vmatprep.subr.bf16.mxu0 0
    %676 = vmatpush1.bf16.msra.mxu0 %v517
    %677 = vmatprep.subr.bf16.mxu0 0
    %678 = vmatpush1.bf16.msra.mxu0 %v518
    %679 = vmatprep.subr.bf16.mxu0 0
    %680 = vmatpush1.bf16.msra.mxu0 %v519
    %681 = vmatprep.subr.bf16.mxu0 0
    %682 = vmatpush1.bf16.msra.mxu0 %v520
    %683 = vmatprep.subr.bf16.mxu0 0
    %684 = vmatpush1.bf16.msra.mxu0 %v521
    %685 = vmatprep.subr.bf16.mxu0 0
    %686 = vmatpush1.bf16.msra.mxu0 %v522
    %687 = vmatprep.subr.bf16.mxu0 0
    %688 = vmatpush1.bf16.msra.mxu0 %v523
    %689 = vmatprep.subr.bf16.mxu0 0
    %690 = vmatpush1.bf16.msra.mxu0 %v524
    %691 = vmatprep.subr.bf16.mxu0 0
    %692 = vmatpush1.bf16.msra.mxu0 %v525
    %693 = vmatprep.subr.bf16.mxu0 0
    %694 = vmatpush1.bf16.msra.mxu0 %v526
    %695 = vmatprep.subr.bf16.mxu0 0
    %696 = vmatpush1.bf16.msra.mxu0 %v527
    %697 = vmatprep.mubr.bf16.mxu0 %v100
    %698 = vmatmul.mubr.bf16.gmra.mrb[0].mxu0 %v99
    %v699 = vpop.f32.mrb[0].mxu0
    %v700 = vadd.f32 %v659, %v699
    %v701 = vpop.f32.mrb[0].mxu0
    %v702 = vpop.f32.mrb[0].mxu0
    %v703 = vadd.f32 %v662, %v702
    %v704 = vpop.f32.mrb[0].mxu0
    %705 = vdwg.mxu0
    %706 = vmatprep.subr.bf16.mxu0 0
    %707 = vmatpush1.bf16.msra.mxu0 %v528
    %708 = vmatprep.subr.bf16.mxu0 0
    %709 = vmatpush1.bf16.msra.mxu0 %v529
    %710 = vmatprep.subr.bf16.mxu0 0
    %711 = vmatpush1.bf16.msra.mxu0 %v530
    %712 = vmatprep.subr.bf16.mxu0 0
    %713 = vmatpush1.bf16.msra.mxu0 %v531
    %714 = vmatprep.subr.bf16.mxu0 0
    %715 = vmatpush1.bf16.msra.mxu0 %v532
    %716 = vmatprep.subr.bf16.mxu0 0
    %717 = vmatpush1.bf16.msra.mxu0 %v533
    %718 = vmatprep.subr.bf16.mxu0 0
    %719 = vmatpush1.bf16.msra.mxu0 %v534
    %720 = vmatprep.subr.bf16.mxu0 0
    %721 = vmatpush1.bf16.msra.mxu0 %v535
    %722 = vmatprep.subr.bf16.mxu0 0
    %723 = vmatpush1.bf16.msra.mxu0 %v536
    %724 = vmatprep.subr.bf16.mxu0 0
    %725 = vmatpush1.bf16.msra.mxu0 %v537
    %726 = vmatprep.subr.bf16.mxu0 0
    %727 = vmatpush1.bf16.msra.mxu0 %v538
    %728 = vmatprep.subr.bf16.mxu0 0
    %729 = vmatpush1.bf16.msra.mxu0 %v539
    %730 = vmatprep.subr.bf16.mxu0 0
    %731 = vmatpush1.bf16.msra.mxu0 %v540
    %732 = vmatprep.subr.bf16.mxu0 0
    %733 = vmatpush1.bf16.msra.mxu0 %v541
    %734 = vmatprep.subr.bf16.mxu0 0
    %735 = vmatpush1.bf16.msra.mxu0 %v542
    %736 = vmatprep.subr.bf16.mxu0 0
    %737 = vmatpush1.bf16.msra.mxu0 %v543
    %738 = vmatprep.mubr.bf16.mxu0 %v102
    %739 = vmatmul.mubr.bf16.gmra.mrb[0].mxu0 %v101
    %v740 = vpop.f32.mrb[0].mxu0
    %v741 = vadd.f32 %v700, %v740
    %v742 = vpop.f32.mrb[0].mxu0
    %v743 = vpop.f32.mrb[0].mxu0
    %v744 = vadd.f32 %v703, %v743
    %v745 = vpop.f32.mrb[0].mxu0
    %746 = vdwg.mxu0
    %747 = vmatprep.subr.bf16.mxu0 0
    %748 = vmatpush1.bf16.msra.mxu0 %v544
    %749 = vmatprep.subr.bf16.mxu0 0
    %750 = vmatpush1.bf16.msra.mxu0 %v545
    %751 = vmatprep.subr.bf16.mxu0 0
    %752 = vmatpush1.bf16.msra.mxu0 %v546
    %753 = vmatprep.subr.bf16.mxu0 0
    %754 = vmatpush1.bf16.msra.mxu0 %v547
    %755 = vmatprep.subr.bf16.mxu0 0
    %756 = vmatpush1.bf16.msra.mxu0 %v548
    %757 = vmatprep.subr.bf16.mxu0 0
    %758 = vmatpush1.bf16.msra.mxu0 %v549
    %759 = vmatprep.subr.bf16.mxu0 0
    %760 = vmatpush1.bf16.msra.mxu0 %v550
    %761 = vmatprep.subr.bf16.mxu0 0
    %762 = vmatpush1.bf16.msra.mxu0 %v551
    %763 = vmatprep.subr.bf16.mxu0 0
    %764 = vmatpush1.bf16.msra.mxu0 %v552
    %765 = vmatprep.subr.bf16.mxu0 0
    %766 = vmatpush1.bf16.msra.mxu0 %v553
    %767 = vmatprep.subr.bf16.mxu0 0
    %768 = vmatpush1.bf16.msra.mxu0 %v554
    %769 = vmatprep.subr.bf16.mxu0 0
    %770 = vmatpush1.bf16.msra.mxu0 %v555
    %771 = vmatprep.subr.bf16.mxu0 0
    %772 = vmatpush1.bf16.msra.mxu0 %v556
    %773 = vmatprep.subr.bf16.mxu0 0
    %774 = vmatpush1.bf16.msra.mxu0 %v557
    %775 = vmatprep.subr.bf16.mxu0 0
    %776 = vmatpush1.bf16.msra.mxu0 %v558
    %777 = vmatprep.subr.bf16.mxu0 0
    %778 = vmatpush1.bf16.msra.mxu0 %v559
    %779 = vmatprep.mubr.bf16.mxu0 %v104
    %780 = vmatmul.mubr.bf16.gmra.mrb[0].mxu0 %v103
    %v781 = vpop.f32.mrb[0].mxu0
    %v782 = vadd.f32 %v741, %v781
    %v783 = vpop.f32.mrb[0].mxu0
    %v784 = vpop.f32.mrb[0].mxu0
    %v785 = vadd.f32 %v744, %v784
    %v786 = vpop.f32.mrb[0].mxu0
    %787 = vdwg.mxu0
    %788 = vst [vmem:[#allocation11] sm:$0xff] %v782
    %789 = vst [vmem:[#allocation11 + $0x8] sm:$0xff] %v785
    %v790 = vmul.f32 %v782, 0.5
    %v791 = vmul.f32 %v785, 0.5
    %v792 = vmul.f32 %v790, 1.442695
    %v793 = vpow.pop %v792
    %v794 = vmul.f32 %v791, 1.442695
    %v795 = vpow.pop %v794
    %v796 = vld [vmem:[%s5] sm:$0xff]
    %v797 = vld [vmem:[%s5 + $0x8] sm:$0xff]
    %800 = vrot.lane.b32.xlu0 %v796, 64
    %v801 = vpop.permute.xlu0 %800
    %802 = vrot.lane.b32.xlu0 %v797, 64
    %v803 = vpop.permute.xlu0 %802
    %v806 = vmul.f32 %v793, %v801
    %v807 = vmul.f32 %v795, %v803
    %810 = vrot.lane.b32.xlu0 %v806, 64
    %v811 = vpop.permute.xlu0 %810
    %812 = vrot.lane.b32.xlu0 %v807, 64
    %v813 = vpop.permute.xlu0 %812
    %v816 = vadd.f32 %v782, %v811
    %v817 = vadd.f32 %v785, %v813
    %v818 = vpack.c.bf16 %v817, %v816
    %v819 = vld [vmem:[#allocation7] sm:$0xff]
    %v820 = vld [vmem:[#allocation7 + $0x8] sm:$0xff]
    %v821 = vld [vmem:[#allocation7 + $0x10] sm:$0xff]
    %v822 = vld [vmem:[#allocation7 + $0x18] sm:$0xff]
    %v823 = vld [vmem:[#allocation7 + $0x20] sm:$0xff]
    %v824 = vld [vmem:[#allocation7 + $0x28] sm:$0xff]
    %v825 = vld [vmem:[#allocation7 + $0x30] sm:$0xff]
    %v826 = vld [vmem:[#allocation7 + $0x38] sm:$0xff]
    %v827 = vld [vmem:[#allocation7 + $0x40] sm:$0xff]
    %v828 = vld [vmem:[#allocation7 + $0x48] sm:$0xff]
    %v829 = vld [vmem:[#allocation7 + $0x50] sm:$0xff]
    %v830 = vld [vmem:[#allocation7 + $0x58] sm:$0xff]
    %v831 = vld [vmem:[#allocation7 + $0x60] sm:$0xff]
    %v832 = vld [vmem:[#allocation7 + $0x68] sm:$0xff]
    %v833 = vld [vmem:[#allocation7 + $0x70] sm:$0xff]
    %v834 = vld [vmem:[#allocation7 + $0x78] sm:$0xff]
    %v835 = vld [vmem:[#allocation7 + $0x80] sm:$0xff]
    %v836 = vld [vmem:[#allocation7 + $0x88] sm:$0xff]
    %v837 = vld [vmem:[#allocation7 + $0x90] sm:$0xff]
    %v838 = vld [vmem:[#allocation7 + $0x98] sm:$0xff]
    %v839 = vld [vmem:[#allocation7 + $0xa0] sm:$0xff]
    %v840 = vld [vmem:[#allocation7 + $0xa8] sm:$0xff]
    %v841 = vld [vmem:[#allocation7 + $0xb0] sm:$0xff]
    %v842 = vld [vmem:[#allocation7 + $0xb8] sm:$0xff]
    %v843 = vld [vmem:[#allocation7 + $0xc0] sm:$0xff]
    %v844 = vld [vmem:[#allocation7 + $0xc8] sm:$0xff]
    %v845 = vld [vmem:[#allocation7 + $0xd0] sm:$0xff]
    %v846 = vld [vmem:[#allocation7 + $0xd8] sm:$0xff]
    %v847 = vld [vmem:[#allocation7 + $0xe0] sm:$0xff]
    %v848 = vld [vmem:[#allocation7 + $0xe8] sm:$0xff]
    %v849 = vld [vmem:[#allocation7 + $0xf0] sm:$0xff]
    %v850 = vld [vmem:[#allocation7 + $0xf8] sm:$0xff]
    %v851 = vld [vmem:[#allocation8] sm:$0xff]
    %v853 = vlaneseq
    %v854 = vshrl.u32 %v853, 7
    %v855 = vsub.s32 0, %v854
    %v856 = vrot.slane %v851, %v855
    %v857 = vlaneseq
    %v858 = vshrl.u32 %v857, 7
    %v859 = vsub.s32 1, %v858
    %v860 = vrot.slane %v851, %v859
    %v861 = vlaneseq
    %v862 = vshrl.u32 %v861, 7
    %v863 = vsub.s32 2, %v862
    %v864 = vrot.slane %v851, %v863
    %v865 = vlaneseq
    %v866 = vshrl.u32 %v865, 7
    %v867 = vsub.s32 3, %v866
    %v868 = vrot.slane %v851, %v867
    %v869 = vlaneseq
    %v870 = vshrl.u32 %v869, 7
    %v871 = vsub.s32 4, %v870
    %v872 = vrot.slane %v851, %v871
    %v873 = vlaneseq
    %v874 = vshrl.u32 %v873, 7
    %v875 = vsub.s32 5, %v874
    %v876 = vrot.slane %v851, %v875
    %v877 = vlaneseq
    %v878 = vshrl.u32 %v877, 7
    %v879 = vsub.s32 6, %v878
    %v880 = vrot.slane %v851, %v879
    %v881 = vlaneseq
    %v882 = vshrl.u32 %v881, 7
    %v883 = vsub.s32 7, %v882
    %v884 = vrot.slane %v851, %v883
    %v925 = vunpack.c.l.b16 %v819
    %v926 = vunpack.c.h.b16 %v819
    %v927 = vunpack.c.l.b16 %v820
    %v928 = vunpack.c.h.b16 %v820
    %v929 = vunpack.c.l.b16 %v821
    %v930 = vunpack.c.h.b16 %v821
    %v931 = vunpack.c.l.b16 %v822
    %v932 = vunpack.c.h.b16 %v822
    %v933 = vunpack.c.l.b16 %v823
    %v934 = vunpack.c.h.b16 %v823
    %v935 = vunpack.c.l.b16 %v824
    %v936 = vunpack.c.h.b16 %v824
    %v937 = vunpack.c.l.b16 %v825
    %v938 = vunpack.c.h.b16 %v825
    %v939 = vunpack.c.l.b16 %v826
    %v940 = vunpack.c.h.b16 %v826
    %v941 = vunpack.c.l.b16 %v827
    %v942 = vunpack.c.h.b16 %v827
    %v943 = vunpack.c.l.b16 %v828
    %v944 = vunpack.c.h.b16 %v828
    %v945 = vunpack.c.l.b16 %v829
    %v946 = vunpack.c.h.b16 %v829
    %v947 = vunpack.c.l.b16 %v830
    %v948 = vunpack.c.h.b16 %v830
    %v949 = vunpack.c.l.b16 %v831
    %v950 = vunpack.c.h.b16 %v831
    %v951 = vunpack.c.l.b16 %v832
    %v952 = vunpack.c.h.b16 %v832
    %v953 = vunpack.c.l.b16 %v833
    %v954 = vunpack.c.h.b16 %v833
    %v955 = vunpack.c.l.b16 %v834
    %v956 = vunpack.c.h.b16 %v834
    %v957 = vunpack.c.l.b16 %v835
    %v958 = vunpack.c.h.b16 %v835
    %v959 = vunpack.c.l.b16 %v836
    %v960 = vunpack.c.h.b16 %v836
    %v961 = vunpack.c.l.b16 %v837
    %v962 = vunpack.c.h.b16 %v837
    %v963 = vunpack.c.l.b16 %v838
    %v964 = vunpack.c.h.b16 %v838
    %v965 = vunpack.c.l.b16 %v839
    %v966 = vunpack.c.h.b16 %v839
    %v967 = vunpack.c.l.b16 %v840
    %v968 = vunpack.c.h.b16 %v840
    %v969 = vunpack.c.l.b16 %v841
    %v970 = vunpack.c.h.b16 %v841
    %v971 = vunpack.c.l.b16 %v842
    %v972 = vunpack.c.h.b16 %v842
    %v973 = vunpack.c.l.b16 %v843
    %v974 = vunpack.c.h.b16 %v843
    %v975 = vunpack.c.l.b16 %v844
    %v976 = vunpack.c.h.b16 %v844
    %v977 = vunpack.c.l.b16 %v845
    %v978 = vunpack.c.h.b16 %v845
    %v979 = vunpack.c.l.b16 %v846
    %v980 = vunpack.c.h.b16 %v846
    %v981 = vunpack.c.l.b16 %v847
    %v982 = vunpack.c.h.b16 %v847
    %v983 = vunpack.c.l.b16 %v848
    %v984 = vunpack.c.h.b16 %v848
    %v985 = vunpack.c.l.b16 %v849
    %v986 = vunpack.c.h.b16 %v849
    %v987 = vunpack.c.l.b16 %v850
    %v988 = vunpack.c.h.b16 %v850
    %v989 = vpack.c.b16 %v933, %v925
    %v990 = vpack.c.b16 %v934, %v926
    %v991 = vpack.c.b16 %v935, %v927
    %v992 = vpack.c.b16 %v936, %v928
    %v993 = vpack.c.b16 %v937, %v929
    %v994 = vpack.c.b16 %v938, %v930
    %v995 = vpack.c.b16 %v939, %v931
    %v996 = vpack.c.b16 %v940, %v932
    %v997 = vpack.c.b16 %v949, %v941
    %v998 = vpack.c.b16 %v950, %v942
    %v999 = vpack.c.b16 %v951, %v943
    %v1000 = vpack.c.b16 %v952, %v944
    %v1001 = vpack.c.b16 %v953, %v945
    %v1002 = vpack.c.b16 %v954, %v946
    %v1003 = vpack.c.b16 %v955, %v947
    %v1004 = vpack.c.b16 %v956, %v948
    %v1005 = vpack.c.b16 %v965, %v957
    %v1006 = vpack.c.b16 %v966, %v958
    %v1007 = vpack.c.b16 %v967, %v959
    %v1008 = vpack.c.b16 %v968, %v960
    %v1009 = vpack.c.b16 %v969, %v961
    %v1010 = vpack.c.b16 %v970, %v962
    %v1011 = vpack.c.b16 %v971, %v963
    %v1012 = vpack.c.b16 %v972, %v964
    %v1013 = vpack.c.b16 %v981, %v973
    %v1014 = vpack.c.b16 %v982, %v974
    %v1015 = vpack.c.b16 %v983, %v975
    %v1016 = vpack.c.b16 %v984, %v976
    %v1017 = vpack.c.b16 %v985, %v977
    %v1018 = vpack.c.b16 %v986, %v978
    %v1019 = vpack.c.b16 %v987, %v979
    %v1020 = vpack.c.b16 %v988, %v980
    %vm1053 = vcmask 523264
    %v1055 = vsel %vm1053, %v818, 0
    %1057 = vmatprep.subr.bf16.mxu0 %v990
    %1058 = vmatpush1.bf16.msra.mxu0 %v989
    %1059 = vmatprep.subr.bf16.mxu0 %v998
    %1060 = vmatpush1.bf16.msra.mxu0 %v997
    %1061 = vmatprep.subr.bf16.mxu0 %v1006
    %1062 = vmatpush1.bf16.msra.mxu0 %v1005
    %1063 = vmatprep.subr.bf16.mxu0 %v1014
    %1064 = vmatpush1.bf16.msra.mxu0 %v1013
    %1065 = vmatprep.subr.bf16.mxu0 0
    %1066 = vmatpush1.bf16.msra.mxu0 0
    %1067 = vmatprep.subr.bf16.mxu0 0
    %1068 = vmatpush1.bf16.msra.mxu0 0
    %1069 = vmatprep.subr.bf16.mxu0 0
    %1070 = vmatpush1.bf16.msra.mxu0 0
    %1071 = vmatprep.subr.bf16.mxu0 0
    %1072 = vmatpush1.bf16.msra.mxu0 0
    %1073 = vmatprep.subr.bf16.mxu0 0
    %1074 = vmatpush1.bf16.msra.mxu0 0
    %1075 = vmatprep.subr.bf16.mxu0 0
    %1076 = vmatpush1.bf16.msra.mxu0 0
    %1077 = vmatprep.subr.bf16.mxu0 0
    %1078 = vmatpush1.bf16.msra.mxu0 0
    %1079 = vmatprep.subr.bf16.mxu0 0
    %1080 = vmatpush1.bf16.msra.mxu0 0
    %1081 = vmatprep.subr.bf16.mxu0 0
    %1082 = vmatpush1.bf16.msra.mxu0 0
    %1083 = vmatprep.subr.bf16.mxu0 0
    %1084 = vmatpush1.bf16.msra.mxu0 0
    %1085 = vmatprep.subr.bf16.mxu0 0
    %1086 = vmatpush1.bf16.msra.mxu0 0
    %1087 = vmatprep.subr.bf16.mxu0 0
    %1088 = vmatpush1.bf16.msra.mxu0 0
    %1089 = vmatprep.mubr.bf16.mxu0 0
    %1090 = vmatmul.mubr.bf16.gmra.mrb[0].mxu0 %v1055
    %v1091 = vpop.f32.mrb[0].mxu0
    %v1092 = vadd.f32 %v856, %v1091
    %v1093 = vpop.f32.mrb[0].mxu0
    %v1094 = vadd.f32 %v860, %v1093
    %v1095 = vpop.f32.mrb[0].mxu0
    %v1096 = vadd.f32 %v856, %v1095
    %v1097 = vpop.f32.mrb[0].mxu0
    %v1098 = vadd.f32 %v860, %v1097
    %1099 = vdwg.mxu0
    %1100 = vmatprep.subr.bf16.mxu0 %v992
    %1101 = vmatpush1.bf16.msra.mxu0 %v991
    %1102 = vmatprep.subr.bf16.mxu0 %v1000
    %1103 = vmatpush1.bf16.msra.mxu0 %v999
    %1104 = vmatprep.subr.bf16.mxu0 %v1008
    %1105 = vmatpush1.bf16.msra.mxu0 %v1007
    %1106 = vmatprep.subr.bf16.mxu0 %v1016
    %1107 = vmatpush1.bf16.msra.mxu0 %v1015
    %1108 = vmatprep.subr.bf16.mxu0 0
    %1109 = vmatpush1.bf16.msra.mxu0 0
    %1110 = vmatprep.subr.bf16.mxu0 0
    %1111 = vmatpush1.bf16.msra.mxu0 0
    %1112 = vmatprep.subr.bf16.mxu0 0
    %1113 = vmatpush1.bf16.msra.mxu0 0
    %1114 = vmatprep.subr.bf16.mxu0 0
    %1115 = vmatpush1.bf16.msra.mxu0 0
    %1116 = vmatprep.subr.bf16.mxu0 0
    %1117 = vmatpush1.bf16.msra.mxu0 0
    %1118 = vmatprep.subr.bf16.mxu0 0
    %1119 = vmatpush1.bf16.msra.mxu0 0
    %1120 = vmatprep.subr.bf16.mxu0 0
    %1121 = vmatpush1.bf16.msra.mxu0 0
    %1122 = vmatprep.subr.bf16.mxu0 0
    %1123 = vmatpush1.bf16.msra.mxu0 0
    %1124 = vmatprep.subr.bf16.mxu0 0
    %1125 = vmatpush1.bf16.msra.mxu0 0
    %1126 = vmatprep.subr.bf16.mxu0 0
    %1127 = vmatpush1.bf16.msra.mxu0 0
    %1128 = vmatprep.subr.bf16.mxu0 0
    %1129 = vmatpush1.bf16.msra.mxu0 0
    %1130 = vmatprep.subr.bf16.mxu0 0
    %1131 = vmatpush1.bf16.msra.mxu0 0
    %1132 = vmatprep.mubr.bf16.mxu0 0
    %1133 = vmatmul.mubr.bf16.gmra.mrb[0].mxu0 %v1055
    %v1134 = vpop.f32.mrb[0].mxu0
    %v1135 = vadd.f32 %v864, %v1134
    %v1136 = vpop.f32.mrb[0].mxu0
    %v1137 = vadd.f32 %v868, %v1136
    %v1138 = vpop.f32.mrb[0].mxu0
    %v1139 = vadd.f32 %v864, %v1138
    %v1140 = vpop.f32.mrb[0].mxu0
    %v1141 = vadd.f32 %v868, %v1140
    %1142 = vdwg.mxu0
    %1143 = vmatprep.subr.bf16.mxu0 %v994
    %1144 = vmatpush1.bf16.msra.mxu0 %v993
    %1145 = vmatprep.subr.bf16.mxu0 %v1002
    %1146 = vmatpush1.bf16.msra.mxu0 %v1001
    %1147 = vmatprep.subr.bf16.mxu0 %v1010
    %1148 = vmatpush1.bf16.msra.mxu0 %v1009
    %1149 = vmatprep.subr.bf16.mxu0 %v1018
    %1150 = vmatpush1.bf16.msra.mxu0 %v1017
    %1151 = vmatprep.subr.bf16.mxu0 0
    %1152 = vmatpush1.bf16.msra.mxu0 0
    %1153 = vmatprep.subr.bf16.mxu0 0
    %1154 = vmatpush1.bf16.msra.mxu0 0
    %1155 = vmatprep.subr.bf16.mxu0 0
    %1156 = vmatpush1.bf16.msra.mxu0 0
    %1157 = vmatprep.subr.bf16.mxu0 0
    %1158 = vmatpush1.bf16.msra.mxu0 0
    %1159 = vmatprep.subr.bf16.mxu0 0
    %1160 = vmatpush1.bf16.msra.mxu0 0
    %1161 = vmatprep.subr.bf16.mxu0 0
    %1162 = vmatpush1.bf16.msra.mxu0 0
    %1163 = vmatprep.subr.bf16.mxu0 0
    %1164 = vmatpush1.bf16.msra.mxu0 0
    %1165 = vmatprep.subr.bf16.mxu0 0
    %1166 = vmatpush1.bf16.msra.mxu0 0
    %1167 = vmatprep.subr.bf16.mxu0 0
    %1168 = vmatpush1.bf16.msra.mxu0 0
    %1169 = vmatprep.subr.bf16.mxu0 0
    %1170 = vmatpush1.bf16.msra.mxu0 0
    %1171 = vmatprep.subr.bf16.mxu0 0
    %1172 = vmatpush1.bf16.msra.mxu0 0
    %1173 = vmatprep.subr.bf16.mxu0 0
    %1174 = vmatpush1.bf16.msra.mxu0 0
    %1175 = vmatprep.mubr.bf16.mxu0 0
    %1176 = vmatmul.mubr.bf16.gmra.mrb[0].mxu0 %v1055
    %v1177 = vpop.f32.mrb[0].mxu0
    %v1178 = vadd.f32 %v872, %v1177
    %v1179 = vpop.f32.mrb[0].mxu0
    %v1180 = vadd.f32 %v876, %v1179
    %v1181 = vpop.f32.mrb[0].mxu0
    %v1182 = vadd.f32 %v872, %v1181
    %v1183 = vpop.f32.mrb[0].mxu0
    %v1184 = vadd.f32 %v876, %v1183
    %1185 = vdwg.mxu0
    %1186 = vmatprep.subr.bf16.mxu0 %v996
    %1187 = vmatpush1.bf16.msra.mxu0 %v995
    %1188 = vmatprep.subr.bf16.mxu0 %v1004
    %1189 = vmatpush1.bf16.msra.mxu0 %v1003
    %1190 = vmatprep.subr.bf16.mxu0 %v1012
    %1191 = vmatpush1.bf16.msra.mxu0 %v1011
    %1192 = vmatprep.subr.bf16.mxu0 %v1020
    %1193 = vmatpush1.bf16.msra.mxu0 %v1019
    %1194 = vmatprep.subr.bf16.mxu0 0
    %1195 = vmatpush1.bf16.msra.mxu0 0
    %1196 = vmatprep.subr.bf16.mxu0 0
    %1197 = vmatpush1.bf16.msra.mxu0 0
    %1198 = vmatprep.subr.bf16.mxu0 0
    %1199 = vmatpush1.bf16.msra.mxu0 0
    %1200 = vmatprep.subr.bf16.mxu0 0
    %1201 = vmatpush1.bf16.msra.mxu0 0
    %1202 = vmatprep.subr.bf16.mxu0 0
    %1203 = vmatpush1.bf16.msra.mxu0 0
    %1204 = vmatprep.subr.bf16.mxu0 0
    %1205 = vmatpush1.bf16.msra.mxu0 0
    %1206 = vmatprep.subr.bf16.mxu0 0
    %1207 = vmatpush1.bf16.msra.mxu0 0
    %1208 = vmatprep.subr.bf16.mxu0 0
    %1209 = vmatpush1.bf16.msra.mxu0 0
    %1210 = vmatprep.subr.bf16.mxu0 0
    %1211 = vmatpush1.bf16.msra.mxu0 0
    %1212 = vmatprep.subr.bf16.mxu0 0
    %1213 = vmatpush1.bf16.msra.mxu0 0
    %1214 = vmatprep.subr.bf16.mxu0 0
    %1215 = vmatpush1.bf16.msra.mxu0 0
    %1216 = vmatprep.subr.bf16.mxu0 0
    %1217 = vmatpush1.bf16.msra.mxu0 0
    %1218 = vmatprep.mubr.bf16.mxu0 0
    %1219 = vmatmul.mubr.bf16.gmra.mrb[0].mxu0 %v1055
    %v1220 = vpop.f32.mrb[0].mxu0
    %v1221 = vadd.f32 %v880, %v1220
    %v1222 = vpop.f32.mrb[0].mxu0
    %v1223 = vadd.f32 %v884, %v1222
    %v1224 = vpop.f32.mrb[0].mxu0
    %v1225 = vadd.f32 %v880, %v1224
    %v1226 = vpop.f32.mrb[0].mxu0
    %v1227 = vadd.f32 %v884, %v1226
    %1228 = vdwg.mxu0
    %v1229 = vpack.c.bf16 %v1096, %v1092
    %v1230 = vpack.c.bf16 %v1098, %v1094
    %v1231 = vpack.c.bf16 %v1139, %v1135
    %v1232 = vpack.c.bf16 %v1141, %v1137
    %v1233 = vpack.c.bf16 %v1182, %v1178
    %v1234 = vpack.c.bf16 %v1184, %v1180
    %v1235 = vpack.c.bf16 %v1225, %v1221
    %v1236 = vpack.c.bf16 %v1227, %v1223
    %v1245 = vunpack.c.l.b16 %v1229
    %v1246 = vunpack.c.l.b16 %v1230
    %v1247 = vunpack.c.l.b16 %v1231
    %v1248 = vunpack.c.l.b16 %v1232
    %v1249 = vunpack.c.l.b16 %v1233
    %v1250 = vunpack.c.l.b16 %v1234
    %v1251 = vunpack.c.l.b16 %v1235
    %v1252 = vunpack.c.l.b16 %v1236
    %v1253 = vunpack.c.h.b16 %v1229
    %v1254 = vunpack.c.h.b16 %v1230
    %v1255 = vunpack.c.h.b16 %v1231
    %v1256 = vunpack.c.h.b16 %v1232
    %v1257 = vunpack.c.h.b16 %v1233
    %v1258 = vunpack.c.h.b16 %v1234
    %v1259 = vunpack.c.h.b16 %v1235
    %v1260 = vunpack.c.h.b16 %v1236
    %v1261 = vpack.c.b16 %v1246, %v1245
    %v1262 = vpack.c.b16 %v1248, %v1247
    %v1263 = vpack.c.b16 %v1250, %v1249
    %v1264 = vpack.c.b16 %v1252, %v1251
    %v1265 = vpack.c.b16 %v1254, %v1253
    %v1266 = vpack.c.b16 %v1256, %v1255
    %v1267 = vpack.c.b16 %v1258, %v1257
    %v1268 = vpack.c.b16 %v1260, %v1259
    %1277 = vst [vmem:[#allocation10] sm:$0xff] %v1261
    %1278 = vst [vmem:[#allocation10 + $0x8] sm:$0xff] %v1262
    %1279 = vst [vmem:[#allocation10 + $0x10] sm:$0xff] %v1263
    %1280 = vst [vmem:[#allocation10 + $0x18] sm:$0xff] %v1264
    %1281 = vst [vmem:[#allocation10 + $0x20] sm:$0xff] %v1265
    %1282 = vst [vmem:[#allocation10 + $0x28] sm:$0xff] %v1266
    %1283 = vst [vmem:[#allocation10 + $0x30] sm:$0xff] %v1267
    %1284 = vst [vmem:[#allocation10 + $0x38] sm:$0xff] %v1268
    // Predicated region
    $region42: #{tpu_custom_call.1} parent=1 // pred_check
      _
    $region43: #{tpu_custom_call.1} parent=1 // pred_check_branch
      %1286 = sbr.rel (0) target = $region45
    $region44: #{tpu_custom_call.1} parent=1 // pred_region
      %s1288 = ssub.s32 1024, 1024
      %1289 = vsyncadd [#allocation4], %s1288
      %s1290 = sshll.u32 [#allocation10], 4
      %s1291 = int_to_ptr.vmem [resolvable:$true] %s1290
      %1296 = dma.vmem_to_hbm [thread:$0]  %s1291, 1024, %s6, [#allocation4], 512, 512, 32
    $region45: #{tpu_custom_call.1} parent=1 // pred_fallthru
      _
    // Predicated region
    $region46: #{tpu_custom_call.1} parent=1 // pred_check
      _
    $region47: #{tpu_custom_call.1} parent=1 // pred_check_branch
      %1298 = sbr.rel (0) target = $region49
    $region48: #{tpu_custom_call.1} parent=1 // pred_region
      %s1300 = ssub.s32 256, 256
      %1301 = vsyncadd [#allocation12], %s1300
      %s1302 = sshll.u32 [#allocation11], 4
      %s1303 = int_to_ptr.vmem [resolvable:$true] %s1302
      %1308 = dma.vmem_to_hbm [thread:$0]  %s1303, 256, %s7, [#allocation12], 128, 128, 8
    $region49: #{tpu_custom_call.1} parent=1 // pred_fallthru
      _
    // Predicated region
    $region50: #{tpu_custom_call.1} parent=1 // pred_check
      _
    $region51: #{tpu_custom_call.1} parent=1 // pred_check_branch
      %1310 = sbr.rel (0) target = $region53
    $region52: #{tpu_custom_call.1} parent=1 // pred_region
      %1311 = dma.done [#allocation4], 1024
    $region53: #{tpu_custom_call.1} parent=1 // pred_fallthru
      _
    // Predicated region
    $region54: #{tpu_custom_call.1} parent=1 // pred_check
      _
    $region55: #{tpu_custom_call.1} parent=1 // pred_check_branch
      %1313 = sbr.rel (0) target = $region57
    $region56: #{tpu_custom_call.1} parent=1 // pred_region
      %1314 = dma.done [#allocation12], 256
    $region57: #{tpu_custom_call.1} parent=1 // pred_fallthru
      _
    %1315 = vsyncpa [#allocation3], 1
    %1316 = vsyncpa [#allocation6], 1
    %1317 = vsyncpa [#allocation9], 1
    %1318 = vsyncpa [#allocation4], 1
    %1319 = vsyncpa [#allocation12], 1

</llo_original>
